<compile_context>
chip_gen: v7x
topology: tpu7x:2x2x1
jax: 0.10.0
libtpu: 0.0.40
codegen_flags: <defaults>
</compile_context>

<pallas_src>
import jax
import jax.numpy as jnp
from jax.experimental import pallas as pl
from jax.experimental.pallas import tpu as pltpu


def _attn_kernel(x_ref, w_ref, b_ref, o_ref):
    # x_ref: (TB, T, H) block of encoder outputs in their NATIVE dtype
    # w_ref: (1, H) attention weight (f32, VMEM, same block every step)
    # b_ref: (1, 1) attention bias in SMEM (scalar path, no VMEM tile)
    # o_ref: (TB, H) output block
    x = x_ref[...].astype(jnp.float32)           # per-tile cast, HBM stays native
    w = w_ref[...].reshape(1, 1, -1)             # (1, 1, H) f32
    b = b_ref[0, 0]                              # scalar from SMEM

    # _score: energy = Linear(tanh(x)).  VPU multiply + in-lane reduce over H
    # instead of a degenerate (H x 1) MXU matmul.
    m = jnp.tanh(x)                              # (TB, T, H)
    e = jnp.sum(m * w, axis=-1) + b              # (TB, T)  lane-dense scores

    # softmax over the time axis (PyTorch softmax dim=1), all on (TB, T)
    e = e - jnp.max(e, axis=-1, keepdims=True)
    p = jnp.exp(e)
    inv_l = pl.reciprocal(jnp.sum(p, axis=-1, keepdims=True), approx=True)  # EUP
    a = p * inv_l                                # (TB, T)

    # weighted sum of the ORIGINAL encoder outputs (not tanh'd), then tanh
    ws = jnp.sum(a[:, :, None] * x, axis=1)      # (TB, H)
    o_ref[...] = jnp.tanh(ws).astype(o_ref.dtype)


def _tpu_budget():
    """(physical per-core VMEM bytes, assumed TensorCore count), best effort."""
    vmem_phys = 64 << 20                         # conservative default (v7x-like)
    try:
        info = pltpu.get_tpu_info()
        vmem_phys = int(getattr(info, "vmem_capacity_bytes", vmem_phys))
    except Exception:
        pass
    # v7x is the only generation with 2 TensorCores per chip and the only one
    # with <=64 MiB per-core VMEM; 128-MiB chips (v5e/v6e) are single-TC.
    num_cores = 1 if vmem_phys >= (100 << 20) else 2
    return vmem_phys, num_cores


def _pick_tiling(B, T, H, itemsize):
    """Pick batch rows per grid step and the scoped-VMEM limit (generation aware)."""
    vmem_phys, num_cores = _tpu_budget()
    # scoped-VMEM budget: ~96 MiB on 128-MiB chips (v5e/v6e), ~48 MiB on v7x.
    vmem_cap = (96 << 20) if vmem_phys >= (100 << 20) else (48 << 20)

    # Live VMEM per batch row: 2x double-buffered native-dtype input block plus
    # ~3 f32 (T, H) elementwise temporaries (f32 cast, tanh(x), a*x) that get
    # materialized before the cross-sublane reduce over T.
    per_row = T * H * (2 * itemsize + 3 * 4)
    headroom = 4 << 20
    tb_vmem = max(1, (vmem_cap - headroom) // per_row)

    # Target ~4 MiB of input bytes per block: big enough that the BlockSpec
    # pipeline sits near the HBM roofline, small enough to double-buffer.
    tb_target = max(1, (4 << 20) // max(1, T * H * itemsize))

    tb = min(tb_target, tb_vmem, B)

    # v7x only: make sure both TensorCores get at least one block each.
    if num_cores > 1 and B >= 16:
        tb = min(tb, max(8, B // num_cores))

    # sublane-dense rounding: 8 rows for f32, 16 for bf16 (packed sublanes)
    if itemsize == 2 and tb >= 16:
        tb = (tb // 16) * 16
    elif tb >= 8:
        tb = (tb // 8) * 8
    # keep the block sublane-aligned whenever B allows (also guarantees the
    # (tb, H) output block satisfies the (8, 128) tiling rule for multi-block
    # grids: tb < 8 only happens when B < 8, i.e. a single full-extent block).
    tb = max(tb, min(8, B), 1)

    num_blocks = pl.cdiv(B, tb)

    working = tb * per_row + 4 * tb * H * 4 + (256 << 10)
    vmem_limit = int(min(max(vmem_cap, working + headroom),
                         max(vmem_phys - (8 << 20), 32 << 20)))
    return tb, num_blocks, vmem_limit


@jax.jit
def attn_shou_peng_2016(encoder_outputs, weight, bias):
    """encoder_outputs: (B, T, H) any float dtype; weight: (1, H); bias: (1,) -> (B, H)."""
    B, T, H = encoder_outputs.shape
    itemsize = jnp.dtype(encoder_outputs.dtype).itemsize
    tb, num_blocks, vmem_limit = _pick_tiling(B, T, H, itemsize)

    w = weight.astype(jnp.float32)
    b2d = bias.reshape(1, 1).astype(jnp.float32)

    out = pl.pallas_call(
        _attn_kernel,
        out_shape=jax.ShapeDtypeStruct((num_blocks * tb, H), encoder_outputs.dtype),
        grid_spec=pltpu.PrefetchScalarGridSpec(
            num_scalar_prefetch=0,
            grid=(num_blocks,),
            in_specs=[
                pl.BlockSpec((tb, T, H), lambda i: (i, 0, 0)),   # native dtype
                pl.BlockSpec((1, H), lambda i: (0, 0)),
                pl.BlockSpec(memory_space=pltpu.MemorySpace.SMEM),
            ],
            out_specs=pl.BlockSpec((tb, H), lambda i: (i, 0)),
        ),
        compiler_params=pltpu.CompilerParams(
            dimension_semantics=("parallel",),
            vmem_limit_bytes=vmem_limit),
    )(encoder_outputs, w, b2d)
    # Rows >= B only exist when the last grid block overruns the batch; each
    # row is independent, so the unspecified tail rows are simply sliced off.
    return out[:B]


def _reference(encoder_outputs, weight, bias):
    m = jnp.tanh(encoder_outputs)                              # (B, T, H)
    e = jnp.einsum("bth,oh->bto", m, weight) + bias            # (B, T, 1)
    a = jax.nn.softmax(e, axis=1)                              # (B, T, 1)
    ws = jnp.sum(a * encoder_outputs, axis=1)                  # (B, H)
    return jnp.tanh(ws)


if __name__ == "__main__":
    T, H = 8, 32
    key = jax.random.PRNGKey(0)
    k_x, k_w, k_b, k_x2, k_x3 = jax.random.split(key, 5)

    # deterministic parameter init mimicking nn.Linear(hidden, 1):
    # U(-1/sqrt(H), 1/sqrt(H)) for both weight (1, H) and bias (1,)
    bound = 1.0 / (H ** 0.5)
    weight = jax.random.uniform(k_w, (1, H), jnp.float32, -bound, bound)
    bias = jax.random.uniform(k_b, (1,), jnp.float32, -bound, bound)

    # tolerance loosened slightly: the softmax denominator uses the EUP
    # approximate reciprocal (pl.reciprocal(approx=True)).
    TOL = 5e-3

    # small shape matching the module convention (batch=2, seq=8, hidden=32)
    B = 2
    x = jax.random.normal(k_x, (B, T, H), jnp.float32)
    out = jax.block_until_ready(attn_shou_peng_2016(x, weight, bias))
    ref = _reference(x, weight, bias)
    assert out.shape == (B, H)
    assert jnp.allclose(out, ref, atol=TOL, rtol=TOL), "mismatch vs reference (B=2)"

    # ragged batch (B % tb != 0) exercising the Pallas boundary block + slice
    B2 = 20
    x2 = jax.random.normal(k_x2, (B2, T, H), jnp.float32)
    out2 = jax.block_until_ready(attn_shou_peng_2016(x2, weight, bias))
    ref2 = _reference(x2, weight, bias)
    assert out2.shape == (B2, H)
    assert jnp.allclose(out2, ref2, atol=TOL, rtol=TOL), "mismatch vs reference (B=20)"

    # native bf16 encoder outputs (no wrapper upcast -> half the HBM read bytes)
    B3 = 64
    x3 = jax.random.normal(k_x3, (B3, T, H), jnp.float32).astype(jnp.bfloat16)
    out3 = jax.block_until_ready(attn_shou_peng_2016(x3, weight, bias))
    ref3 = _reference(x3.astype(jnp.float32), weight, bias)
    assert out3.shape == (B3, H)
    assert jnp.allclose(out3.astype(jnp.float32), ref3, atol=3e-2, rtol=3e-2), \
        "mismatch vs reference (bf16, B=64)"

    print("KERNEL_OK")
</pallas_src>

<mosaic_0001>
module attributes {stable_mosaic.version = 11 : i64} {
  func.func @_attn_kernel(%arg0: i32, %arg1: memref<2x8x32xf32, #tpu.memory_space<vmem>>, %arg2: memref<1x32xf32, #tpu.memory_space<vmem>>, %arg3: memref<1x1xf32, #tpu.memory_space<smem>>, %arg4: memref<2x32xf32, #tpu.memory_space<vmem>>) attributes {dimension_semantics = [#tpu.dimension_semantics<parallel>], iteration_bounds = array<i64: 1>, scalar_prefetch = 0 : i64, scratch_operands = 0 : i64, tpu.core_type = #tpu.core_type<tc>, window_params = [{transform_indices = @transform_0, window_bounds = array<i64: 2, 8, 32>}, {pipeline_mode = #tpu.pipeline_mode<synchronous>, transform_indices = @transform_1, window_bounds = array<i64: 1, 32>}, {transform_indices = @transform_2, window_bounds = array<i64: 1, 1>}, {transform_indices = @transform_3, window_bounds = array<i64: 2, 32>}]} {
    %c0 = arith.constant 0 : index
    %c0_0 = arith.constant 0 : index
    %c0_1 = arith.constant 0 : index
    %0 = vector.load %arg1[%c0, %c0_0, %c0_1] : memref<2x8x32xf32, #tpu.memory_space<vmem>>, vector<2x8x32xf32>
    %c0_2 = arith.constant 0 : index
    %c0_3 = arith.constant 0 : index
    %1 = vector.load %arg2[%c0_2, %c0_3] : memref<1x32xf32, #tpu.memory_space<vmem>>, vector<1x32xf32>
    %2 = vector.shape_cast %1 : vector<1x32xf32> to vector<1x1x32xf32>
    %c0_4 = arith.constant 0 : index
    %c0_5 = arith.constant 0 : index
    %3 = memref.load %arg3[%c0_4, %c0_5] : memref<1x1xf32, #tpu.memory_space<smem>>
    %4 = math.tanh %0 : vector<2x8x32xf32>
    %5 = vector.broadcast %2 : vector<1x1x32xf32> to vector<2x8x32xf32>
    %6 = arith.mulf %4, %5 : vector<2x8x32xf32>
    %cst = arith.constant dense<0.000000e+00> : vector<2x8xf32>
    %7 = vector.multi_reduction <add>, %6, %cst [2] : vector<2x8x32xf32> to vector<2x8xf32>
    %8 = vector.broadcast %3 : f32 to vector<2x8xf32>
    %9 = arith.addf %7, %8 : vector<2x8xf32>
    %cst_6 = arith.constant dense<0xFF800000> : vector<2xf32>
    %10 = vector.multi_reduction <maximumf>, %9, %cst_6 [1] : vector<2x8xf32> to vector<2xf32>
    %11 = vector.shape_cast %10 : vector<2xf32> to vector<2x1xf32>
    %12 = vector.broadcast %11 : vector<2x1xf32> to vector<2x8xf32>
    %13 = arith.subf %9, %12 : vector<2x8xf32>
    %14 = math.exp %13 : vector<2x8xf32>
    %cst_7 = arith.constant dense<0.000000e+00> : vector<2xf32>
    %15 = vector.multi_reduction <add>, %14, %cst_7 [1] : vector<2x8xf32> to vector<2xf32>
    %16 = vector.shape_cast %15 : vector<2xf32> to vector<2x1xf32>
    %17 = tpu.reciprocal %16 {approx = true} : vector<2x1xf32> -> vector<2x1xf32>
    %18 = vector.broadcast %17 : vector<2x1xf32> to vector<2x8xf32>
    %19 = arith.mulf %14, %18 : vector<2x8xf32>
    %20 = vector.shape_cast %19 : vector<2x8xf32> to vector<2x8x1xf32>
    %21 = vector.broadcast %20 : vector<2x8x1xf32> to vector<2x8x32xf32>
    %22 = arith.mulf %21, %0 : vector<2x8x32xf32>
    %cst_8 = arith.constant dense<0.000000e+00> : vector<2x32xf32>
    %23 = vector.multi_reduction <add>, %22, %cst_8 [1] : vector<2x8x32xf32> to vector<2x32xf32>
    %24 = math.tanh %23 : vector<2x32xf32>
    %c0_9 = arith.constant 0 : index
    %c0_10 = arith.constant 0 : index
    %25 = vector.load %arg4[%c0_9, %c0_10] : memref<2x32xf32, #tpu.memory_space<vmem>>, vector<2x32xf32>
    tpu.vector_store %arg4[%c0_9, %c0_10], %24 {strides = array<i32>} : memref<2x32xf32, #tpu.memory_space<vmem>>, vector<2x32xf32>,
    return
  }
  func.func @transform_0(%arg0: i32) -> (i32, i32, i32) {
    %c0_i32 = arith.constant 0 : i32
    %c0_i32_0 = arith.constant 0 : i32
    %c0_i32_1 = arith.constant 0 : i32
    return %arg0, %c0_i32, %c0_i32_0 : i32, i32, i32
  }
  func.func @transform_1(%arg0: i32) -> (i32, i32) {
    %c0_i32 = arith.constant 0 : i32
    %c0_i32_0 = arith.constant 0 : i32
    %c0_i32_1 = arith.constant 0 : i32
    return %c0_i32, %c0_i32_0 : i32, i32
  }
  func.func @transform_2(%arg0: i32) -> (i32, i32) {
    %c0_i32 = arith.constant 0 : i32
    %c0_i32_0 = arith.constant 0 : i32
    %c0_i32_1 = arith.constant 0 : i32
    return %c0_i32, %c0_i32_0 : i32, i32
  }
  func.func @transform_3(%arg0: i32) -> (i32, i32) {
    %c0_i32 = arith.constant 0 : i32
    %c0_i32_0 = arith.constant 0 : i32
    return %arg0, %c0_i32 : i32, i32
  }
}

</mosaic_0001>

<llo_original>
// kernel: attn_shou_peng_2016.1
$region0: #{attn_shou_peng_2016.1}
  #allocation0 [shape = 'u32[]', space=smem, size = 0x4, offset = 0x4, fixed_abs, tag = 'smem constant byte address 0x4 - core index']
  #allocation1 [shape = 'u32[144,128]{1,0:T(1,128)}', space=vmem, size = 0x12000, scoped, tag = 'internal scratch']
  #allocation2 [shape = 'f32[1,1]{1,0:T(1,128)S(6)}', space=smem, size = 0x200, scoped, tag = 'scoped memory for attn_shou_peng_2016.1']
  %s0 = inlined_call_operand.hbm [shape: f32[2,8,32], index: 0, kind: input, shape index: {}]
  %s1 = inlined_call_operand.vmem [shape: f32[1,32], index: 1, kind: input, shape index: {}]
  %s2 = inlined_call_operand.<no memory space> [shape: f32[1,1], index: 2, kind: input, shape index: {}]
  %s3 = inlined_call_operand.hbm [shape: f32[2,32], index: 3, kind: output, shape index: {}]
  %s4 = sld [smem:[#allocation0]]
  $region26: #{attn_shou_peng_2016.1} parent=0
    _
  %s6 = ssub.s32 1, %s4
  %s7 = scalar_select 0, %s6, %s4
  %8 = sst [smem:[#allocation2]] %s2
  $region1: #{attn_shou_peng_2016.1} parent=0
    #allocation3 [shape = 'u8[8192]{0}', space=vmem, size = 0x2000, scoped, tag = 'input window, operand 0, single buffered']
    #allocation4 [shape = 's32[1]{0}', space=sflag, size = 0x4, scoped, tag = 'scoped memory for attn_shou_peng_2016.1']
    #allocation5 [shape = 's32[1]{0}', space=sflag, size = 0x4, scoped, tag = 'scoped memory for attn_shou_peng_2016.1']
    #allocation6 [shape = 'u8[1024]{0}', space=vmem, size = 0x400, scoped, tag = 'output window, operand 0, single buffered']
    %9 = vsyncpa [#allocation4], 0
    %10 = vsyncpa [#allocation5], 0
    // Predicated region
    $region2: #{attn_shou_peng_2016.1} parent=1 // pred_check
      _
    $region3: #{attn_shou_peng_2016.1} parent=1 // pred_check_branch
      %12 = sbr.rel (0) target = $region5
    $region4: #{attn_shou_peng_2016.1} parent=1 // pred_region
      %s14 = ssub.s32 256, 256
      %15 = vsyncadd [#allocation4], %s14
      %s16 = sshll.u32 [#allocation3], 4
      %s17 = int_to_ptr.vmem [resolvable:$true] %s16
      %22 = dma.hbm_to_vmem [thread:$0]  %s0, 256, %s17, [#allocation4], 128, 128, 8
    $region5: #{attn_shou_peng_2016.1} parent=1 // pred_fallthru
      _
    // Predicated region
    $region6: #{attn_shou_peng_2016.1} parent=1 // pred_check
      _
    $region7: #{attn_shou_peng_2016.1} parent=1 // pred_check_branch
      %24 = sbr.rel (0) target = $region9
    $region8: #{attn_shou_peng_2016.1} parent=1 // pred_region
      _
    $region9: #{attn_shou_peng_2016.1} parent=1 // pred_fallthru
      _
    // Predicated region
    $region10: #{attn_shou_peng_2016.1} parent=1 // pred_check
      _
    $region11: #{attn_shou_peng_2016.1} parent=1 // pred_check_branch
      %26 = sbr.rel (0) target = $region13
    $region12: #{attn_shou_peng_2016.1} parent=1 // pred_region
      _
    $region13: #{attn_shou_peng_2016.1} parent=1 // pred_fallthru
      _
    // Predicated region
    $region14: #{attn_shou_peng_2016.1} parent=1 // pred_check
      _
    $region15: #{attn_shou_peng_2016.1} parent=1 // pred_check_branch
      %28 = sbr.rel (0) target = $region17
    $region16: #{attn_shou_peng_2016.1} parent=1 // pred_region
      %29 = dma.done [#allocation4], 256
    $region17: #{attn_shou_peng_2016.1} parent=1 // pred_fallthru
      _
    %v30 = vld [vmem:[#allocation3] sm:$0xff]
    %v31 = vld [vmem:[#allocation3 + $0x8] sm:$0xff]
    %v32 = vld [vmem:[%s1] sm:$0x1]
    %s33 = sld [smem:[#allocation2]]
    %v34 = vtanh.pop %v30
    %v35 = vtanh.pop %v31
    %v37 = vlaneseq
    %v38 = vshrl.u32 %v37, 7
    %v39 = vsub.s32 0, %v38
    %v40 = vrot.slane %v32, %v39
    %v42 = vmul.f32 %v34, %v40
    %v43 = vmul.f32 %v35, %v40
    %vm44 = vcmask 261120
    %v45 = vsel %vm44, %v42, 0.0
    %46 = vadd.xlane.f32.xlu0 %v45
    %v47 = vpop.xlane.xlu0 %46
    %v48 = vsel %vm44, %v43, 0.0
    %49 = vadd.xlane.f32.xlu0 %v48
    %v50 = vpop.xlane.xlu0 %49
    %v51 = vstv %s33
    %v52 = vadd.f32 %v47, %v51
    %v53 = vadd.f32 %v50, %v51
    %v56 = vlaneseq
    %v57 = vand.u32 %v56, 127
    %v58 = vlaneseq
    %v59 = vshrl.u32 %v58, 7
    %v60 = vsub.s32 %v57, %v59
    %v61 = vrot.slane %v52, %v60
    %v62 = vlaneseq
    %v63 = vshrl.u32 %v62, 7
    %v64 = vsub.s32 %v57, %v63
    %v65 = vrot.slane %v53, %v64
    %vm66 = vcmask 1041409
    %v67 = vsel %vm66, %v65, %v61
    %vm69 = vcmask 58368
    %v70 = vsel %vm69, %v67, -inf
    %71 = vmax.xlane.f32.xlu0 %v70
    %v72 = vpop.xlane.xlu0 %71
    %v74 = vlaneseq
    %v75 = vshrl.u32 %v74, 7
    %v76 = vsub.s32 0, %v75
    %v77 = vrot.slane %v72, %v76
    %v78 = vlaneseq
    %v79 = vshrl.u32 %v78, 7
    %v80 = vsub.s32 1, %v79
    %v81 = vrot.slane %v72, %v80
    %v84 = vsub.f32 %v52, %v77
    %v85 = vsub.f32 %v53, %v81
    %v86 = vmul.f32 %v84, 1.442695
    %v87 = vpow.pop %v86
    %v88 = vmul.f32 %v85, 1.442695
    %v89 = vpow.pop %v88
    %92 = vset.pattern.permute.xlu0 0
    %93 = vperm.xlu0 %92, %v87
    %v94 = vpop.permute.xlu0 %93
    %95 = vset.pattern.permute.xlu0 0
    %96 = vperm.xlu0 %95, %v89
    %v97 = vpop.permute.xlu0 %96
    %v98 = vlaneseq
    %v99 = vshrl.u32 %v98, 7
    %v100 = vsub.s32 %v57, %v99
    %v101 = vrot.slane %v94, %v100
    %v102 = vlaneseq
    %v103 = vshrl.u32 %v102, 7
    %v104 = vsub.s32 %v57, %v103
    %v105 = vrot.slane %v97, %v104
    %v106 = vsel %vm66, %v105, %v101
    %v108 = vsel %vm69, %v106, 0.0
    %109 = vadd.xlane.f32.xlu0 %v108
    %v110 = vpop.xlane.xlu0 %109
    %v111 = vrcp.pop %v110
    %v113 = vlaneseq
    %v114 = vshrl.u32 %v113, 7
    %v115 = vsub.s32 0, %v114
    %v116 = vrot.slane %v111, %v115
    %v117 = vlaneseq
    %v118 = vshrl.u32 %v117, 7
    %v119 = vsub.s32 1, %v118
    %v120 = vrot.slane %v111, %v119
    %v123 = vmul.f32 %v87, %v116
    %v124 = vmul.f32 %v89, %v120
    %126 = vset.pattern.permute.xlu0 0
    %127 = vperm.xlu0 %126, %v123
    %v128 = vpop.permute.xlu0 %127
    %131 = vset.pattern.permute.xlu0 0
    %132 = vperm.xlu0 %131, %v124
    %v133 = vpop.permute.xlu0 %132
    %v135 = vmul.f32 %v128, %v30
    %v136 = vmul.f32 %v133, %v31
    %v137 = vsel %vm44, %v135, 0.0
    %v138 = vrot.slane %v137, 4
    %v139 = vadd.f32 %v137, %v138
    %v140 = vrot.slane %v139, 2
    %v141 = vadd.f32 %v139, %v140
    %v142 = vrot.slane %v141, 1
    %v143 = vadd.f32 %v141, %v142
    %v144 = vsel %vm44, %v136, 0.0
    %v145 = vrot.slane %v144, 4
    %v146 = vadd.f32 %v144, %v145
    %v147 = vrot.slane %v146, 2
    %v148 = vadd.f32 %v146, %v147
    %v149 = vrot.slane %v148, 1
    %v150 = vadd.f32 %v148, %v149
    %v151 = vtanh.pop %v143
    %v152 = vtanh.pop %v150
    %v155 = vsel %vm66, %v152, %v151
    %vm157 = vcmask 254976
    %158 = vst.msk [vmem:[#allocation6] sm:$0x3] %vm157, %v155
    // Predicated region
    $region18: #{attn_shou_peng_2016.1} parent=1 // pred_check
      _
    $region19: #{attn_shou_peng_2016.1} parent=1 // pred_check_branch
      %160 = sbr.rel (0) target = $region21
    $region20: #{attn_shou_peng_2016.1} parent=1 // pred_region
      %s162 = ssub.s32 32, 32
      %163 = vsyncadd [#allocation5], %s162
      %s165 = sshll.u32 [#allocation6], 4
      %s166 = int_to_ptr.vmem [resolvable:$true] %s165
      %168 = dma.vmem_to_hbm [thread:$0]  %s166, 32, %s3, [#allocation5]
    $region21: #{attn_shou_peng_2016.1} parent=1 // pred_fallthru
      _
    // Predicated region
    $region22: #{attn_shou_peng_2016.1} parent=1 // pred_check
      _
    $region23: #{attn_shou_peng_2016.1} parent=1 // pred_check_branch
      %170 = sbr.rel (0) target = $region25
    $region24: #{attn_shou_peng_2016.1} parent=1 // pred_region
      %171 = dma.done [#allocation5], 32
    $region25: #{attn_shou_peng_2016.1} parent=1 // pred_fallthru
      _
    %172 = vsyncpa [#allocation4], 1
    %173 = vsyncpa [#allocation5], 1

</llo_original>
